<compile_context>
chip_gen: v5e
topology: v5e:2x2
jax: 0.10.0
libtpu: 0.0.40
codegen_flags: <defaults>
</compile_context>

<pallas_src>
import functools

import jax
import jax.numpy as jnp
from jax import lax
from jax.experimental import pallas as pl
from jax.experimental.pallas import tpu as pltpu

_EMB = 2  # frame embedding offset == max equivalent conv padding in the net


# ----------------------------------------------------------------------------
# Tiny one-time probe for the pltpu.roll direction convention (cached).
# ----------------------------------------------------------------------------
_ROLL_DIR_CACHE = []


def _roll_dir():
    """d such that pltpu.roll(x, (d*s) % L, axis)[..., i] == x[..., (i+s) % L]."""
    if not _ROLL_DIR_CACHE:
        def kernel(x_ref, o_ref):
            o_ref[...] = pltpu.roll(x_ref[...], 1, 1)

        x = jnp.tile(jnp.arange(128, dtype=jnp.float32)[None, :], (8, 1))
        y = pl.pallas_call(
            kernel, out_shape=jax.ShapeDtypeStruct((8, 128), jnp.float32))(x)
        val = float(y[0, 0])
        # jnp.roll convention -> y[0,0] == 127 (use d=-1); opposite -> 1 (d=+1)
        _ROLL_DIR_CACHE.append(1 if abs(val - 1.0) < 0.5 else -1)
    return _ROLL_DIR_CACHE[0]


# ----------------------------------------------------------------------------
# Fused Pallas kernel: whole CAE forward for one image per grid step.
# ----------------------------------------------------------------------------
def _cae_kernel(x_ref, w1, w2, w3, w4, w5, b1, b2, b3, b4, b5, m_ref, o_ref,
                *, wf, mf, roll_dir):
    def shifted(x, s):
        # view[:, i] = x[:, (i + s) % mf]  (valid frame reads never wrap)
        if s == 0:
            return x
        return pltpu.roll(x, (roll_dir * s) % mf, 1)

    def conv(x, w_ref, b_ref, k, p, act):
        # implicit im2col: k*k lane-rotated views, each hit with a small
        # (Cout, Cin) @ (Cin, mf) MXU matmul, accumulated in f32.
        cout = b_ref.shape[0]
        acc = jnp.zeros((cout, mf), jnp.float32)
        for ky in range(k):
            for kx in range(k):
                s = (ky - p) * wf + (kx - p)
                acc = acc + jnp.dot(w_ref[ky * k + kx], shifted(x, s),
                                    preferred_element_type=jnp.float32)
        acc = acc + b_ref[...]                      # bias folded in-kernel
        if act == "relu":
            return jnp.maximum(acc, 0.0)
        return 1.0 / (1.0 + jnp.exp(-acc))          # sigmoid

    def pool2x2(x):                                 # 2x2, stride-1 max pool
        r = x
        for s in (1, wf, wf + 1):
            r = jnp.maximum(r, shifted(x, s))
        return r

    def mask(x, row):                               # re-zero outside valid
        return x * m_ref[row:row + 1, :]

    x = x_ref[0]                                    # (3, mf)  valid HxW
    x = conv(x, w1, b1, 3, 1, "relu")               # (8, mf)  valid HxW
    x = mask(pool2x2(x), 0)                         # (8, mf)  valid (H-1)
    x = conv(x, w2, b2, 3, 1, "relu")               # (12,mf)  valid (H-1)
    x = mask(pool2x2(x), 1)                         # (12,mf)  valid (H-2)
    x = mask(conv(x, w3, b3, 3, 1, "relu"), 1)      # (16,mf)  valid (H-2)
    x = mask(conv(x, w4, b4, 4, 2, "relu"), 0)      # (12,mf)  valid (H-1)  t_conv1
    x = conv(x, w5, b5, 4, 2, "sigmoid")            # (3, mf)  valid HxW    t_conv2
    o_ref[0] = x


# ----------------------------------------------------------------------------
# Layout glue (one-time weight packing, frame embedding / extraction, masks)
# ----------------------------------------------------------------------------
def _pack_conv_w(w):
    # Conv2d (Cout, Cin, kh, kw) -> (kh*kw, Cout, Cin), tap-major.
    co, ci, kh, kw = w.shape
    return jnp.transpose(w, (2, 3, 0, 1)).reshape(kh * kw, co, ci).astype(jnp.float32)


def _pack_tconv_w(w):
    # stride-1 ConvTranspose2d (Cin, Cout, kh, kw) == Conv2d with the spatially
    # flipped kernel, swapped channels, and padding (k - 1 - p).
    ci, co, kh, kw = w.shape
    return (jnp.transpose(w[:, :, ::-1, ::-1], (2, 3, 1, 0))
            .reshape(kh * kw, co, ci).astype(jnp.float32))


def _valid_mask(hf, wf, mf, vh, vw):
    m = jnp.zeros((hf, wf), jnp.float32).at[_EMB:_EMB + vh, _EMB:_EMB + vw].set(1.0)
    m = m.reshape(1, hf * wf)
    return jnp.pad(m, ((0, 0), (0, mf - hf * wf)))


def cae_forward(params, x_nchw):
    n, c, h, w = x_nchw.shape
    hf, wf = h + 2 * _EMB, w + 2 * _EMB
    mf = ((hf * wf + 127) // 128) * 128            # lane-dense, 128-aligned

    # Embed the image into the zero frame (pure layout plumbing, done once).
    xf = jnp.pad(x_nchw.astype(jnp.float32),
                 ((0, 0), (0, 0), (_EMB, _EMB), (_EMB, _EMB)))
    xf = jnp.pad(xf.reshape(n, c, hf * wf), ((0, 0), (0, 0), (0, mf - hf * wf)))

    w1 = _pack_conv_w(params["w1"]);   b1 = params["b1"].reshape(-1, 1).astype(jnp.float32)
    w2 = _pack_conv_w(params["w2"]);   b2 = params["b2"].reshape(-1, 1).astype(jnp.float32)
    w3 = _pack_conv_w(params["w3"]);   b3 = params["b3"].reshape(-1, 1).astype(jnp.float32)
    w4 = _pack_tconv_w(params["tw1"]); b4 = params["tb1"].reshape(-1, 1).astype(jnp.float32)
    w5 = _pack_tconv_w(params["tw2"]); b5 = params["tb2"].reshape(-1, 1).astype(jnp.float32)

    masks = jnp.concatenate(
        [_valid_mask(hf, wf, mf, h - 1, w - 1),     # row 0: valid (H-1,W-1)
         _valid_mask(hf, wf, mf, h - 2, w - 2)],    # row 1: valid (H-2,W-2)
        axis=0)

    def full(arr):
        zeros = (0,) * arr.ndim
        return pl.BlockSpec(arr.shape, lambda i: zeros)

    kernel = functools.partial(_cae_kernel, wf=wf, mf=mf, roll_dir=_roll_dir())

    out = pl.pallas_call(
        kernel,
        out_shape=jax.ShapeDtypeStruct((n, 3, mf), jnp.float32),
        grid=(n,),
        in_specs=[pl.BlockSpec((1, c, mf), lambda i: (i, 0, 0)),
                  full(w1), full(w2), full(w3), full(w4), full(w5),
                  full(b1), full(b2), full(b3), full(b4), full(b5),
                  full(masks)],
        out_specs=pl.BlockSpec((1, 3, mf), lambda i: (i, 0, 0)),
        compiler_params=pltpu.CompilerParams(
            dimension_semantics=("parallel",)),
    )(xf, w1, w2, w3, w4, w5, b1, b2, b3, b4, b5, masks)

    out = out[:, :, :hf * wf].reshape(n, 3, hf, wf)
    return out[:, :, _EMB:_EMB + h, _EMB:_EMB + w]   # already NCHW


# ----------------------------------------------------------------------------
# Deterministic parameter init (PyTorch-style uniform(-1/sqrt(fan_in)))
# ----------------------------------------------------------------------------
def init_params(key):
    def u(key, shape, fan_in):
        bound = 1.0 / jnp.sqrt(jnp.float32(fan_in))
        return jax.random.uniform(key, shape, jnp.float32, -bound, bound)

    ks = jax.random.split(key, 10)
    return {
        # Conv2d weights: (Cout, Cin, kH, kW)
        "w1": u(ks[0], (8, 3, 3, 3), 3 * 9),    "b1": u(ks[1], (8,), 3 * 9),
        "w2": u(ks[2], (12, 8, 3, 3), 8 * 9),   "b2": u(ks[3], (12,), 8 * 9),
        "w3": u(ks[4], (16, 12, 3, 3), 12 * 9), "b3": u(ks[5], (16,), 12 * 9),
        # ConvTranspose2d weights: (Cin, Cout, kH, kW)
        "tw1": u(ks[6], (16, 12, 4, 4), 16 * 16), "tb1": u(ks[7], (12,), 16 * 16),
        "tw2": u(ks[8], (12, 3, 4, 4), 12 * 16),  "tb2": u(ks[9], (3,), 12 * 16),
    }


# ----------------------------------------------------------------------------
# Pure-JAX reference (lax convs) for correctness checking
# ----------------------------------------------------------------------------
def ref_forward(params, x):
    def conv(x, w, b, pad):
        y = lax.conv_general_dilated(
            x, w, (1, 1), [(pad, pad), (pad, pad)],
            dimension_numbers=("NCHW", "OIHW", "NCHW"))
        return y + b.reshape(1, -1, 1, 1)

    def tconv(x, w, b, pad):
        wf = jnp.transpose(w[:, :, ::-1, ::-1], (1, 0, 2, 3))
        return conv(x, wf, b, w.shape[2] - 1 - pad)

    def pool(x):
        return lax.reduce_window(x, -jnp.inf, lax.max,
                                 (1, 1, 2, 2), (1, 1, 1, 1), "VALID")

    x = jax.nn.relu(conv(x, params["w1"], params["b1"], 1))
    x = pool(x)
    x = jax.nn.relu(conv(x, params["w2"], params["b2"], 1))
    x = pool(x)
    x = jax.nn.relu(conv(x, params["w3"], params["b3"], 1))
    x = jax.nn.relu(tconv(x, params["tw1"], params["tb1"], 1))
    return jax.nn.sigmoid(tconv(x, params["tw2"], params["tb2"], 1))


if __name__ == "__main__":
    key = jax.random.PRNGKey(0)
    k_params, k_x = jax.random.split(key)
    params = init_params(k_params)
    x = jax.random.uniform(k_x, (2, 3, 16, 16), jnp.float32)   # NCHW input

    _roll_dir()                      # prime the one-time roll-direction probe

    y = jax.jit(cae_forward)(params, x)
    y = jax.block_until_ready(y)

    y_ref = ref_forward(params, x)
    assert y.shape == (2, 3, 16, 16), y.shape
    err = float(jnp.max(jnp.abs(y - y_ref)))
    assert err < 1e-4, err
    print("KERNEL_OK")
</pallas_src>

<mosaic_0001>
module attributes {stable_mosaic.version = 11 : i64} {
  func.func @kernel(%arg0: memref<8x128xf32, #tpu.memory_space<vmem>>, %arg1: memref<8x128xf32, #tpu.memory_space<vmem>>) attributes {dimension_semantics = [], scalar_prefetch = 0 : i64, scratch_operands = 0 : i64, tpu.core_type = #tpu.core_type<tc>} {
    %c0 = arith.constant 0 : index
    %c0_0 = arith.constant 0 : index
    %0 = vector.load %arg0[%c0, %c0_0] : memref<8x128xf32, #tpu.memory_space<vmem>>, vector<8x128xf32>
    %c1_i32 = arith.constant 1 : i32
    %1 = tpu.dynamic_rotate %0 by %c1_i32 dim 1 : vector<8x128xf32>, i32 -> vector<8x128xf32>
    %c0_1 = arith.constant 0 : index
    %c0_2 = arith.constant 0 : index
    %2 = vector.load %arg1[%c0_1, %c0_2] : memref<8x128xf32, #tpu.memory_space<vmem>>, vector<8x128xf32>
    tpu.vector_store %arg1[%c0_1, %c0_2], %1 {strides = array<i32>} : memref<8x128xf32, #tpu.memory_space<vmem>>, vector<8x128xf32>,
    return
  }
}

</mosaic_0001>

<llo_original>
// kernel: tpu_custom_call.1
$region0: #{tpu_custom_call.1}
  #allocation0 [shape = 'u32[]', space=smem, size = 0x4, offset = 0x4, fixed_abs, tag = 'smem constant byte address 0x4 - core index']
  #allocation1 [shape = 'u32[72,128]{1,0:T(1,128)}', space=vmem, size = 0x9000, scoped, tag = 'internal scratch']
  %s0 = inlined_call_operand.hbm [shape: f32[8,128], index: 0, kind: input, shape index: {}]
  %s1 = inlined_call_operand.hbm [shape: f32[8,128], index: 1, kind: output, shape index: {}]
  %s2 = sld [smem:[#allocation0]]
  $region18: #{tpu_custom_call.1} parent=0
    _
  %s4 = ssub.s32 1, %s2
  %s5 = scalar_select 0, %s4, %s2
  $region1: #{tpu_custom_call.1} parent=0
    #allocation2 [shape = 'u8[4096]{0}', space=vmem, size = 0x1000, scoped, tag = 'input window, operand 0, single buffered']
    #allocation3 [shape = 's32[1]{0}', space=sflag, size = 0x4, scoped, tag = 'scoped memory for tpu_custom_call.1']
    #allocation4 [shape = 's32[1]{0}', space=sflag, size = 0x4, scoped, tag = 'scoped memory for tpu_custom_call.1']
    #allocation5 [shape = 'u8[4096]{0}', space=vmem, size = 0x1000, scoped, tag = 'output window, operand 0, single buffered']
    %6 = vsyncpa [#allocation3], 0
    %7 = vsyncpa [#allocation4], 0
    // Predicated region
    $region2: #{tpu_custom_call.1} parent=1 // pred_check
      _
    $region3: #{tpu_custom_call.1} parent=1 // pred_check_branch
      %9 = sbr.rel (0) target = $region5
    $region4: #{tpu_custom_call.1} parent=1 // pred_region
      %11 = vsyncadd [#allocation3], 0
      %s13 = sshll.u32 %s0, 4
      %s14 = int_to_ptr.hbm [resolvable:$true] %s13
      %s15 = sshll.u32 [#allocation2], 4
      %s16 = int_to_ptr.vmem [resolvable:$true] %s15
      %18 = dma.hbm_to_vmem [thread:$0]  %s14, 128, %s16, [#allocation3]
    $region5: #{tpu_custom_call.1} parent=1 // pred_fallthru
      _
    // Predicated region
    $region6: #{tpu_custom_call.1} parent=1 // pred_check
      _
    $region7: #{tpu_custom_call.1} parent=1 // pred_check_branch
      %20 = sbr.rel (0) target = $region9
    $region8: #{tpu_custom_call.1} parent=1 // pred_region
      %22 = dma.done [#allocation3], 128
    $region9: #{tpu_custom_call.1} parent=1 // pred_fallthru
      _
    %v23 = vld [vmem:[#allocation2] sm:$0xff]
    %24 = vrot.lane.b32.xlu0 %v23, 1
    %v25 = vpop.permute.xlu0 %24
    %26 = vst [vmem:[#allocation5] sm:$0xff] %v25
    // Predicated region
    $region10: #{tpu_custom_call.1} parent=1 // pred_check
      _
    $region11: #{tpu_custom_call.1} parent=1 // pred_check_branch
      %28 = sbr.rel (0) target = $region13
    $region12: #{tpu_custom_call.1} parent=1 // pred_region
      %30 = vsyncadd [#allocation4], 0
      %s32 = sshll.u32 [#allocation5], 4
      %s33 = int_to_ptr.vmem [resolvable:$true] %s32
      %s34 = sshll.u32 %s1, 4
      %s35 = int_to_ptr.hbm [resolvable:$true] %s34
      %37 = dma.vmem_to_hbm [thread:$0]  %s33, 128, %s35, [#allocation4]
    $region13: #{tpu_custom_call.1} parent=1 // pred_fallthru
      _
    // Predicated region
    $region14: #{tpu_custom_call.1} parent=1 // pred_check
      _
    $region15: #{tpu_custom_call.1} parent=1 // pred_check_branch
      %39 = sbr.rel (0) target = $region17
    $region16: #{tpu_custom_call.1} parent=1 // pred_region
      %41 = dma.done [#allocation4], 128
    $region17: #{tpu_custom_call.1} parent=1 // pred_fallthru
      _
    %42 = vsyncpa [#allocation3], 1
    %43 = vsyncpa [#allocation4], 1

</llo_original>
